<compile_context>
chip_gen: v5e
topology: v5e:2x2
jax: 0.10.0
libtpu: 0.0.40
codegen_flags: <defaults>
</compile_context>

<pallas_src>
import math

import jax
import jax.numpy as jnp
from jax.experimental import pallas as pl
from jax.experimental.pallas import tpu as pltpu


_C1 = math.sqrt(2.0 / math.pi)
_C2 = 0.044715 * _C1


def _gelu_tanh_f32(h):
    # 0.5 * h * (1 + tanh(sqrt(2/pi) * (h + 0.044715 * h^3))) -- matches the
    # PyTorch GLEU module exactly (tanh approximation), Horner form.
    h2 = h * h
    inner = h * (_C1 + _C2 * h2)
    return 0.5 * h * (1.0 + jnp.tanh(inner))


# ----------------------------------------------------------------------------
# Kernels
# ----------------------------------------------------------------------------
def _ffn_resident_kernel(x_ref, w1_ref, b1_ref, w2_ref, b2_ref, o_ref):
    """Weights fully resident in VMEM; one row tile per grid step."""
    h = jnp.dot(x_ref[...], w1_ref[...], preferred_element_type=jnp.float32)
    h = _gelu_tanh_f32(h + b1_ref[...].astype(jnp.float32))
    y = jnp.dot(h.astype(w2_ref.dtype), w2_ref[...],
                preferred_element_type=jnp.float32)
    o_ref[...] = (y + b2_ref[...].astype(jnp.float32)).astype(o_ref.dtype)


def _make_tiled_kernel(bh, acc_in_output):
    """Hidden-tiled path: grid = (row tiles, hidden tiles); hidden is the
    reduction of the second matmul.  If the output dtype is f32, accumulate
    directly into the resident output block (no scratch)."""

    def kernel(x_ref, w1_ref, b1_ref, w2_ref, b2_ref, o_ref, *maybe_acc):
        acc_ref = o_ref if acc_in_output else maybe_acc[0]
        j = pl.program_id(1)

        @pl.when(j == 0)
        def _():
            acc_ref[...] = jnp.zeros_like(acc_ref)

        # First matmul: (bm, E) @ (E, bh) -> (bm, bh), f32 acc on the MXU.
        h = jnp.dot(x_ref[...], w1_ref[...], preferred_element_type=jnp.float32)

        # b1 is resident as (1, H); slice the current hidden window.
        off = pl.multiple_of(j * bh, bh)
        b1 = b1_ref[:, pl.ds(off, bh)].astype(jnp.float32)

        # GELU stays entirely in vregs/VMEM (never touches HBM).
        h = _gelu_tanh_f32(h + b1)

        # Second matmul: accumulate partial (bm, E) output over hidden tiles.
        acc_ref[...] += jnp.dot(h.astype(w2_ref.dtype), w2_ref[...],
                                preferred_element_type=jnp.float32)

        @pl.when(j == pl.num_programs(1) - 1)
        def _():
            o_ref[...] = (acc_ref[...]
                          + b2_ref[...].astype(jnp.float32)).astype(o_ref.dtype)

    return kernel


# ----------------------------------------------------------------------------
# Wrapper
# ----------------------------------------------------------------------------
def _round_up(n, m):
    return ((n + m - 1) // m) * m


def _largest_aligned_divisor(n, preferred, align):
    """Largest t <= preferred with t % align == 0 and n % t == 0, else n."""
    t = min(preferred, n)
    t -= t % align
    while t >= align:
        if n % t == 0:
            return t
        t -= align
    return n


def _vmem_capacity_bytes():
    try:
        info = pltpu.get_tpu_info()
        cap = getattr(info, "vmem_capacity_bytes", None)
        if cap:
            return int(cap)
    except Exception:
        pass
    return 64 * 1024 * 1024  # smallest physical VMEM across v5e/v6e/v7x


def feed_forward(x, w1, b1, w2, b2, *, block_m=512, block_h=256,
                 compute_dtype=None, weights_resident=None,
                 vmem_budget_bytes=None):
    """FeedForwardLayer forward: gelu_tanh(x @ w1 + b1) @ w2 + b2.

    x  : (..., E)
    w1 : (E, H), b1 : (H,)    (H = 4 * E in the PyTorch module)
    w2 : (H, E), b2 : (E,)

    compute_dtype: optional dtype (e.g. jnp.bfloat16) to run the matmuls in;
    f32 accumulation is always used and the output keeps x's original dtype.
    """
    orig_shape = x.shape
    out_dtype = x.dtype
    E = orig_shape[-1]
    H = w1.shape[1]
    assert w1.shape == (E, H) and w2.shape == (H, E)
    assert b1.shape == (H,) and b2.shape == (E,)

    if compute_dtype is not None and jnp.dtype(compute_dtype) != x.dtype:
        x = x.astype(compute_dtype)
        w1 = w1.astype(compute_dtype)
        w2 = w2.astype(compute_dtype)
        # biases are added in f32 inside the kernel; keep them as-is.

    M = x.size // E
    x2d = x.reshape(M, E)              # lane-dense slab (view, no copy)
    b1_2d = b1.reshape(1, H)
    b2_2d = b2.reshape(1, E)

    in_it = x.dtype.itemsize
    w_it = w1.dtype.itemsize
    out_it = jnp.dtype(out_dtype).itemsize
    b_it = b1.dtype.itemsize

    # Sublane alignment for row tiles: 8 (f32) / 16 (bf16) / 32 (int8/fp8).
    align = max(8, 32 // in_it)
    bm = min(block_m, _round_up(M, align))
    bm = max(align, _round_up(bm, align))
    # Megacore: make sure the "parallel" row axis has >= 2 tiles when possible.
    if pl.cdiv(M, bm) < 2 and M > align:
        bm = max(align, _round_up(pl.cdiv(M, 2), align))
    n_row = pl.cdiv(M, bm)

    vmem_cap = _vmem_capacity_bytes()
    budget = (vmem_budget_bytes if vmem_budget_bytes is not None
              else int(vmem_cap * 0.85))

    # Conservative VMEM footprint estimates (inputs/outputs double-buffered,
    # f32 hidden intermediates counted twice for elementwise temps).
    def resident_fp(bm_):
        return (4 * E * H * w_it                       # W1 + W2 (x2 buffers)
                + 2 * bm_ * E * (in_it + out_it)       # x / out tiles
                + 2 * bm_ * H * 4                      # f32 hidden + GELU temps
                + 4 * (H + E) * b_it)                  # biases

    def tiled_fp(bm_, bh_, acc_sep):
        return (2 * bm_ * E * in_it
                + 4 * E * bh_ * w_it                   # W1 + W2 tiles (x2 buffers)
                + 2 * bm_ * E * out_it
                + (bm_ * E * 4 if acc_sep else 0)
                + 2 * bm_ * bh_ * 4                    # f32 hidden + GELU temps
                + 2 * (H + E) * b_it)

    use_resident = weights_resident
    if use_resident is None:
        use_resident = resident_fp(bm) <= budget

    if use_resident:
        footprint = resident_fp(bm)
        grid = (n_row,)
        kernel = _ffn_resident_kernel
        in_specs = [
            pl.BlockSpec((bm, E), lambda i: (i, 0)),   # x row tile
            pl.BlockSpec((E, H), lambda i: (0, 0)),    # W1 (resident)
            pl.BlockSpec((1, H), lambda i: (0, 0)),    # b1 (resident)
            pl.BlockSpec((H, E), lambda i: (0, 0)),    # W2 (resident)
            pl.BlockSpec((1, E), lambda i: (0, 0)),    # b2 (resident)
        ]
        out_specs = pl.BlockSpec((bm, E), lambda i: (i, 0))
        scratch = ()
        dim_sem = ("parallel",)
    else:
        acc_in_out = jnp.dtype(out_dtype) == jnp.dtype(jnp.float32)
        bh = _largest_aligned_divisor(H, min(block_h, H), 128)
        # Shrink the hidden tile, then the row tile, until we fit the budget.
        while tiled_fp(bm, bh, not acc_in_out) > budget and bh > 128:
            nbh = _largest_aligned_divisor(H, bh - 128, 128)
            if nbh >= bh:
                break
            bh = nbh
        while tiled_fp(bm, bh, not acc_in_out) > budget and bm > align:
            bm = max(align, _round_up(bm // 2, align))
        n_row = pl.cdiv(M, bm)
        footprint = tiled_fp(bm, bh, not acc_in_out)
        grid = (n_row, H // bh)
        kernel = _make_tiled_kernel(bh, acc_in_out)
        in_specs = [
            pl.BlockSpec((bm, E), lambda i, j: (i, 0)),   # x row tile
            pl.BlockSpec((E, bh), lambda i, j: (0, j)),   # W1 hidden tile
            pl.BlockSpec((1, H), lambda i, j: (0, 0)),    # b1 (resident, sliced)
            pl.BlockSpec((bh, E), lambda i, j: (j, 0)),   # W2 hidden tile
            pl.BlockSpec((1, E), lambda i, j: (0, 0)),    # b2 (resident)
        ]
        out_specs = pl.BlockSpec((bm, E), lambda i, j: (i, 0))
        scratch = () if acc_in_out else (pltpu.VMEM((bm, E), jnp.float32),)
        dim_sem = ("parallel", "arbitrary")

    vmem_limit = int(min(vmem_cap, max(footprint + (8 << 20), 32 << 20)))

    out2d = pl.pallas_call(
        kernel,
        out_shape=jax.ShapeDtypeStruct((M, E), out_dtype),
        grid=grid,
        in_specs=in_specs,
        out_specs=out_specs,
        scratch_shapes=scratch,
        compiler_params=pltpu.CompilerParams(
            dimension_semantics=dim_sem,
            vmem_limit_bytes=vmem_limit,
        ),
    )(x2d, w1, b1_2d, w2, b2_2d)

    return out2d.reshape(orig_shape)


def _feed_forward_ref(x, w1, b1, w2, b2):
    x32 = x.astype(jnp.float32)
    h = jnp.dot(x32, w1.astype(jnp.float32)) + b1.astype(jnp.float32)
    h = _gelu_tanh_f32(h)
    y = jnp.dot(h, w2.astype(jnp.float32)) + b2.astype(jnp.float32)
    return y.astype(x.dtype)


if __name__ == "__main__":
    key = jax.random.PRNGKey(0)
    k_x, k_w1, k_b1, k_w2, k_b2 = jax.random.split(key, 5)

    # Small shapes consistent with the module: batch=2, seq=8, emb_dim=64.
    batch, seq, emb_dim = 2, 8, 64
    hidden = 4 * emb_dim

    x = jax.random.normal(k_x, (batch, seq, emb_dim), dtype=jnp.float32)
    w1 = jax.random.normal(k_w1, (emb_dim, hidden), dtype=jnp.float32) / math.sqrt(emb_dim)
    b1 = 0.1 * jax.random.normal(k_b1, (hidden,), dtype=jnp.float32)
    w2 = jax.random.normal(k_w2, (hidden, emb_dim), dtype=jnp.float32) / math.sqrt(hidden)
    b2 = 0.1 * jax.random.normal(k_b2, (emb_dim,), dtype=jnp.float32)

    ref = _feed_forward_ref(x, w1, b1, w2, b2)

    # Path A: weights-resident fast path (auto-selected at this size).
    out = jax.block_until_ready(feed_forward(x, w1, b1, w2, b2))
    assert out.shape == x.shape and out.dtype == x.dtype
    assert jnp.allclose(out, ref, atol=1e-4, rtol=1e-4), float(jnp.max(jnp.abs(out - ref)))

    # Path B: hidden-tiled path with accumulate-into-output (f32) variant.
    out_tiled = jax.block_until_ready(
        feed_forward(x, w1, b1, w2, b2, weights_resident=False, block_h=128))
    assert jnp.allclose(out_tiled, ref, atol=1e-4, rtol=1e-4), float(
        jnp.max(jnp.abs(out_tiled - ref)))

    # Optional MXU-native bf16 compute path (f32 accumulation, f32 output).
    out_bf16 = jax.block_until_ready(
        feed_forward(x, w1, b1, w2, b2, compute_dtype=jnp.bfloat16))
    assert out_bf16.dtype == x.dtype
    assert jnp.allclose(out_bf16, ref, atol=1e-1, rtol=5e-2)

    print("KERNEL_OK")
</pallas_src>

<mosaic_0001>
module attributes {stable_mosaic.version = 11 : i64} {
  func.func @_ffn_resident_kernel(%arg0: i32, %arg1: memref<8x64xf32, #tpu.memory_space<vmem>>, %arg2: memref<64x256xf32, #tpu.memory_space<vmem>>, %arg3: memref<1x256xf32, #tpu.memory_space<vmem>>, %arg4: memref<256x64xf32, #tpu.memory_space<vmem>>, %arg5: memref<1x64xf32, #tpu.memory_space<vmem>>, %arg6: memref<8x64xf32, #tpu.memory_space<vmem>>) attributes {dimension_semantics = [#tpu.dimension_semantics<parallel>], iteration_bounds = array<i64: 2>, scalar_prefetch = 0 : i64, scratch_operands = 0 : i64, tpu.core_type = #tpu.core_type<tc>, window_params = [{transform_indices = @transform_0, window_bounds = array<i64: 8, 64>}, {pipeline_mode = #tpu.pipeline_mode<synchronous>, transform_indices = @transform_1, window_bounds = array<i64: 64, 256>}, {pipeline_mode = #tpu.pipeline_mode<synchronous>, transform_indices = @transform_2, window_bounds = array<i64: 1, 256>}, {pipeline_mode = #tpu.pipeline_mode<synchronous>, transform_indices = @transform_3, window_bounds = array<i64: 256, 64>}, {pipeline_mode = #tpu.pipeline_mode<synchronous>, transform_indices = @transform_4, window_bounds = array<i64: 1, 64>}, {transform_indices = @transform_5, window_bounds = array<i64: 8, 64>}]} {
    %c0 = arith.constant 0 : index
    %c0_0 = arith.constant 0 : index
    %0 = vector.load %arg1[%c0, %c0_0] : memref<8x64xf32, #tpu.memory_space<vmem>>, vector<8x64xf32>
    %c0_1 = arith.constant 0 : index
    %c0_2 = arith.constant 0 : index
    %1 = vector.load %arg2[%c0_1, %c0_2] : memref<64x256xf32, #tpu.memory_space<vmem>>, vector<64x256xf32>
    %cst = arith.constant dense<0.000000e+00> : vector<8x256xf32>
    %2 = tpu.matmul %0, %1, %cst {dimension_numbers = #tpu.dot_dimension_numbers<[1], [0], [0], [1], [0, 0, 1, 1], [], []>} : vector<8x64xf32>, vector<64x256xf32>, vector<8x256xf32> -> vector<8x256xf32>
    %c0_3 = arith.constant 0 : index
    %c0_4 = arith.constant 0 : index
    %3 = vector.load %arg3[%c0_3, %c0_4] : memref<1x256xf32, #tpu.memory_space<vmem>>, vector<1x256xf32>
    %4 = vector.broadcast %3 : vector<1x256xf32> to vector<8x256xf32>
    %5 = arith.addf %2, %4 : vector<8x256xf32>
    %6 = arith.mulf %5, %5 : vector<8x256xf32>
    %cst_5 = arith.constant 0.0356774069 : f32
    %7 = vector.broadcast %cst_5 : f32 to vector<8x256xf32>
    %8 = arith.mulf %7, %6 : vector<8x256xf32>
    %cst_6 = arith.constant 0.797884583 : f32
    %9 = vector.broadcast %cst_6 : f32 to vector<8x256xf32>
    %10 = arith.addf %9, %8 : vector<8x256xf32>
    %11 = arith.mulf %5, %10 : vector<8x256xf32>
    %cst_7 = arith.constant 5.000000e-01 : f32
    %12 = vector.broadcast %cst_7 : f32 to vector<8x256xf32>
    %13 = arith.mulf %12, %5 : vector<8x256xf32>
    %14 = math.tanh %11 : vector<8x256xf32>
    %cst_8 = arith.constant 1.000000e+00 : f32
    %15 = vector.broadcast %cst_8 : f32 to vector<8x256xf32>
    %16 = arith.addf %15, %14 : vector<8x256xf32>
    %17 = arith.mulf %13, %16 : vector<8x256xf32>
    %c0_9 = arith.constant 0 : index
    %c0_10 = arith.constant 0 : index
    %18 = vector.load %arg4[%c0_9, %c0_10] : memref<256x64xf32, #tpu.memory_space<vmem>>, vector<256x64xf32>
    %cst_11 = arith.constant dense<0.000000e+00> : vector<8x64xf32>
    %19 = tpu.matmul %17, %18, %cst_11 {dimension_numbers = #tpu.dot_dimension_numbers<[1], [0], [0], [1], [0, 0, 1, 1], [], []>} : vector<8x256xf32>, vector<256x64xf32>, vector<8x64xf32> -> vector<8x64xf32>
    %c0_12 = arith.constant 0 : index
    %c0_13 = arith.constant 0 : index
    %20 = vector.load %arg5[%c0_12, %c0_13] : memref<1x64xf32, #tpu.memory_space<vmem>>, vector<1x64xf32>
    %21 = vector.broadcast %20 : vector<1x64xf32> to vector<8x64xf32>
    %22 = arith.addf %19, %21 : vector<8x64xf32>
    %c0_14 = arith.constant 0 : index
    %c0_15 = arith.constant 0 : index
    %23 = vector.load %arg6[%c0_14, %c0_15] : memref<8x64xf32, #tpu.memory_space<vmem>>, vector<8x64xf32>
    tpu.vector_store %arg6[%c0_14, %c0_15], %22 {strides = array<i32>} : memref<8x64xf32, #tpu.memory_space<vmem>>, vector<8x64xf32>,
    return
  }
  func.func @transform_0(%arg0: i32) -> (i32, i32) {
    %c0_i32 = arith.constant 0 : i32
    %c0_i32_0 = arith.constant 0 : i32
    return %arg0, %c0_i32 : i32, i32
  }
  func.func @transform_1(%arg0: i32) -> (i32, i32) {
    %c0_i32 = arith.constant 0 : i32
    %c0_i32_0 = arith.constant 0 : i32
    %c0_i32_1 = arith.constant 0 : i32
    return %c0_i32, %c0_i32_0 : i32, i32
  }
  func.func @transform_2(%arg0: i32) -> (i32, i32) {
    %c0_i32 = arith.constant 0 : i32
    %c0_i32_0 = arith.constant 0 : i32
    %c0_i32_1 = arith.constant 0 : i32
    return %c0_i32, %c0_i32_0 : i32, i32
  }
  func.func @transform_3(%arg0: i32) -> (i32, i32) {
    %c0_i32 = arith.constant 0 : i32
    %c0_i32_0 = arith.constant 0 : i32
    %c0_i32_1 = arith.constant 0 : i32
    return %c0_i32, %c0_i32_0 : i32, i32
  }
  func.func @transform_4(%arg0: i32) -> (i32, i32) {
    %c0_i32 = arith.constant 0 : i32
    %c0_i32_0 = arith.constant 0 : i32
    %c0_i32_1 = arith.constant 0 : i32
    return %c0_i32, %c0_i32_0 : i32, i32
  }
  func.func @transform_5(%arg0: i32) -> (i32, i32) {
    %c0_i32 = arith.constant 0 : i32
    %c0_i32_0 = arith.constant 0 : i32
    return %arg0, %c0_i32 : i32, i32
  }
}

</mosaic_0001>

<llo_original>
// kernel: tpu_custom_call.1
$region0: #{tpu_custom_call.1}
  #allocation0 [shape = 'u32[]', space=smem, size = 0x4, offset = 0x4, fixed_abs, tag = 'smem constant byte address 0x4 - core index']
  #allocation1 [shape = 'u32[72,128]{1,0:T(1,128)}', space=vmem, size = 0x9000, scoped, tag = 'internal scratch']
  %s0 = inlined_call_operand.vmem [shape: f32[16,64], index: 0, kind: input, shape index: {}]
  %s1 = inlined_call_operand.vmem [shape: f32[64,256], index: 1, kind: input, shape index: {}]
  %s2 = inlined_call_operand.vmem [shape: f32[1,256], index: 2, kind: input, shape index: {}]
  %s3 = inlined_call_operand.vmem [shape: f32[256,64], index: 3, kind: input, shape index: {}]
  %s4 = inlined_call_operand.vmem [shape: f32[1,64], index: 4, kind: input, shape index: {}]
  %s5 = inlined_call_operand.hbm [shape: f32[16,64], index: 5, kind: output, shape index: {}]
  %s6 = sld [smem:[#allocation0]]
  $region53: #{tpu_custom_call.1} parent=0
    _
  %s8 = ssub.s32 1, %s6
  %s9 = scalar_select 0, %s8, %s6
  $region1: #{tpu_custom_call.1} parent=0
    #allocation2 [shape = 'u8[8192]{0}', space=vmem, size = 0x2000, scoped, tag = 'output window, operand 0']
    #allocation3 [shape = 's32[2]{0}', space=sflag, size = 0x8, scoped, tag = 'scoped memory for tpu_custom_call.1']
    %10 = vsyncpa [#allocation3], 0
    %s11 = scalar_lea.sflag [#allocation3], 1
    %12 = vsyncpa %s11, 0
    loop: start=0, step=1, limit=4
    $region2: #{tpu_custom_call.1} parent=1 // loop_pre_header
      _
    $region3: #{tpu_custom_call.1} parent=1 // loop_header
      %s14 = sphi 0, %s18
      %p15 = scmp.ge.s32.totalorder %s14, 4
      %s24 = sphi 0, %s26
      %s27 = sphi 0, %s24
      %s28 = sphi 0, %s27
      %s44 = sphi 0, %s28
      %s48 = sphi 0, %s48
      %s50 = sphi 0, %s48
      %s51 = sphi 0, %s50
      %s65 = sphi 0, %s51
      %s69 = sphi 0, %s69
      %s71 = sphi 0, %s69
      %s72 = sphi 0, %s71
      %s86 = sphi 0, %s72
      %s90 = sphi 0, %s90
      %s92 = sphi 0, %s90
      %s93 = sphi 0, %s92
      %s107 = sphi 0, %s93
      %s111 = sphi 0, %s111
      %s113 = sphi 0, %s111
      %s114 = sphi 0, %s113
      %s128 = sphi 0, %s114
      %s134 = sphi 0, %s136
      %s137 = sphi 0, %s134
      %s138 = sphi 0, %s137
      %s154 = sphi 0, %s138
    $region4: #{tpu_custom_call.1} parent=1 // loop_header_branch
      %17 = sbr.rel (%p15) target = $region8
    $region5: #{tpu_custom_call.1} parent=1 // loop_body
      %s19 = ssub.s32 %s14, 1
      %s20 = ssub.s32 %s14, 2
      %s21 = sadd.s32 %s14, 1
      %s22 = ssub.s32 %s14, %s21
      %p23 = scmp.eq.s32.totalorder %s22, 0
      %s25 = sadd.s32 %s24, 1
      %s26 = scalar_select %p23, %s24, %s25
      %p29 = pneg %p23
      %p30 = scmp.eq.s32.totalorder %s14, 1
      %p31 = por %p29, %p30
      %p32 = scmp.ne.s32.totalorder %s24, %s27
      %p33 = scmp.eq.s32.totalorder %s14, 0
      %p34 = por %p32, %p33
      %p35 = scmp.ne.s32.totalorder %s24, %s27
      %p36 = scmp.eq.s32.totalorder %s19, 1
      %p37 = por %p35, %p36
      %p38 = scmp.ne.s32.totalorder %s27, %s28
      %p39 = scmp.eq.s32.totalorder %s19, 0
      %p40 = por %p38, %p39
      %p41 = scmp.ne.s32.totalorder %s27, %s28
      %p42 = scmp.eq.s32.totalorder %s20, 1
      %p43 = por %p41, %p42
      %p45 = scmp.ne.s32.totalorder %s28, %s44
      %p46 = scmp.eq.s32.totalorder %s20, 0
      %p47 = por %p45, %p46
      %s49 = sadd.s32 %s48, 1
      %p52 = scmp.eq.s32.totalorder %s14, 1
      %p53 = scmp.ne.s32.totalorder %s48, %s50
      %p54 = scmp.eq.s32.totalorder %s14, 0
      %p55 = por %p53, %p54
      %p56 = scmp.ne.s32.totalorder %s48, %s50
      %p57 = scmp.eq.s32.totalorder %s19, 1
      %p58 = por %p56, %p57
      %p59 = scmp.ne.s32.totalorder %s50, %s51
      %p60 = scmp.eq.s32.totalorder %s19, 0
      %p61 = por %p59, %p60
      %p62 = scmp.ne.s32.totalorder %s50, %s51
      %p63 = scmp.eq.s32.totalorder %s20, 1
      %p64 = por %p62, %p63
      %p66 = scmp.ne.s32.totalorder %s51, %s65
      %p67 = scmp.eq.s32.totalorder %s20, 0
      %p68 = por %p66, %p67
      %s70 = sadd.s32 %s69, 1
      %p73 = scmp.eq.s32.totalorder %s14, 1
      %p74 = scmp.ne.s32.totalorder %s69, %s71
      %p75 = scmp.eq.s32.totalorder %s14, 0
      %p76 = por %p74, %p75
      %p77 = scmp.ne.s32.totalorder %s69, %s71
      %p78 = scmp.eq.s32.totalorder %s19, 1
      %p79 = por %p77, %p78
      %p80 = scmp.ne.s32.totalorder %s71, %s72
      %p81 = scmp.eq.s32.totalorder %s19, 0
      %p82 = por %p80, %p81
      %p83 = scmp.ne.s32.totalorder %s71, %s72
      %p84 = scmp.eq.s32.totalorder %s20, 1
      %p85 = por %p83, %p84
      %p87 = scmp.ne.s32.totalorder %s72, %s86
      %p88 = scmp.eq.s32.totalorder %s20, 0
      %p89 = por %p87, %p88
      %s91 = sadd.s32 %s90, 1
      %p94 = scmp.eq.s32.totalorder %s14, 1
      %p95 = scmp.ne.s32.totalorder %s90, %s92
      %p96 = scmp.eq.s32.totalorder %s14, 0
      %p97 = por %p95, %p96
      %p98 = scmp.ne.s32.totalorder %s90, %s92
      %p99 = scmp.eq.s32.totalorder %s19, 1
      %p100 = por %p98, %p99
      %p101 = scmp.ne.s32.totalorder %s92, %s93
      %p102 = scmp.eq.s32.totalorder %s19, 0
      %p103 = por %p101, %p102
      %p104 = scmp.ne.s32.totalorder %s92, %s93
      %p105 = scmp.eq.s32.totalorder %s20, 1
      %p106 = por %p104, %p105
      %p108 = scmp.ne.s32.totalorder %s93, %s107
      %p109 = scmp.eq.s32.totalorder %s20, 0
      %p110 = por %p108, %p109
      %s112 = sadd.s32 %s111, 1
      %p115 = scmp.eq.s32.totalorder %s14, 1
      %p116 = scmp.ne.s32.totalorder %s111, %s113
      %p117 = scmp.eq.s32.totalorder %s14, 0
      %p118 = por %p116, %p117
      %p119 = scmp.ne.s32.totalorder %s111, %s113
      %p120 = scmp.eq.s32.totalorder %s19, 1
      %p121 = por %p119, %p120
      %p122 = scmp.ne.s32.totalorder %s113, %s114
      %p123 = scmp.eq.s32.totalorder %s19, 0
      %p124 = por %p122, %p123
      %p125 = scmp.ne.s32.totalorder %s113, %s114
      %p126 = scmp.eq.s32.totalorder %s20, 1
      %p127 = por %p125, %p126
      %p129 = scmp.ne.s32.totalorder %s114, %s128
      %p130 = scmp.eq.s32.totalorder %s20, 0
      %p131 = por %p129, %p130
      %s132 = ssub.s32 %s14, %s21
      %p133 = scmp.eq.s32.totalorder %s132, 0
      %s135 = sadd.s32 %s134, 1
      %s136 = scalar_select %p133, %s134, %s135
      %p139 = pneg %p133
      %p140 = scmp.eq.s32.totalorder %s14, 1
      %p141 = por %p139, %p140
      %p142 = scmp.ne.s32.totalorder %s134, %s137
      %p143 = scmp.eq.s32.totalorder %s14, 0
      %p144 = por %p142, %p143
      %p145 = scmp.ne.s32.totalorder %s134, %s137
      %p146 = scmp.eq.s32.totalorder %s19, 1
      %p147 = por %p145, %p146
      %p148 = scmp.ne.s32.totalorder %s137, %s138
      %p149 = scmp.eq.s32.totalorder %s19, 0
      %p150 = por %p148, %p149
      %p151 = scmp.ne.s32.totalorder %s137, %s138
      %p152 = scmp.eq.s32.totalorder %s20, 1
      %p153 = por %p151, %p152
      %p155 = scmp.ne.s32.totalorder %s138, %s154
      %p156 = scmp.eq.s32.totalorder %s20, 0
      %p157 = por %p155, %p156
      %p158 = scmp.le.s32.totalorder 1, %s14
      %p159 = scmp.lt.s32.totalorder %s14, 3
      %p160 = pnand %p158, %p159
      %p161 = pneg %p160
      // Predicated region
      $region9: #{tpu_custom_call.1} parent=5 // pred_check
        _
      $region10: #{tpu_custom_call.1} parent=5 // pred_check_branch
        %163 = sbr.rel (%p160) target = $region12
      $region11: #{tpu_custom_call.1} parent=5 // pred_region
        %s164 = ssub.s32 %s14, 1
        // Predicated region
        $region13: #{tpu_custom_call.1} parent=11 // pred_check
          %p165 = pneg %p61
        $region14: #{tpu_custom_call.1} parent=11 // pred_check_branch
          %167 = sbr.rel (%p165) target = $region16
        $region15: #{tpu_custom_call.1} parent=11 // pred_region
          _
        $region16: #{tpu_custom_call.1} parent=11 // pred_fallthru
          _
        // Predicated region
        $region17: #{tpu_custom_call.1} parent=11 // pred_check
          %p168 = pneg %p82
        $region18: #{tpu_custom_call.1} parent=11 // pred_check_branch
          %170 = sbr.rel (%p168) target = $region20
        $region19: #{tpu_custom_call.1} parent=11 // pred_region
          _
        $region20: #{tpu_custom_call.1} parent=11 // pred_fallthru
          _
        // Predicated region
        $region21: #{tpu_custom_call.1} parent=11 // pred_check
          %p171 = pneg %p103
        $region22: #{tpu_custom_call.1} parent=11 // pred_check_branch
          %173 = sbr.rel (%p171) target = $region24
        $region23: #{tpu_custom_call.1} parent=11 // pred_region
          _
        $region24: #{tpu_custom_call.1} parent=11 // pred_fallthru
          _
        // Predicated region
        $region25: #{tpu_custom_call.1} parent=11 // pred_check
          %p174 = pneg %p124
        $region26: #{tpu_custom_call.1} parent=11 // pred_check_branch
          %176 = sbr.rel (%p174) target = $region28
        $region27: #{tpu_custom_call.1} parent=11 // pred_region
          _
        $region28: #{tpu_custom_call.1} parent=11 // pred_fallthru
          _
      $region12: #{tpu_custom_call.1} parent=5 // pred_fallthru
        _
      %p177 = scmp.lt.s32.totalorder %s14, 2
      // Predicated region
      $region29: #{tpu_custom_call.1} parent=5 // pred_check
        %p178 = pneg %p177
      $region30: #{tpu_custom_call.1} parent=5 // pred_check_branch
        %180 = sbr.rel (%p178) target = $region32
      $region31: #{tpu_custom_call.1} parent=5 // pred_region
        // Predicated region
        $region33: #{tpu_custom_call.1} parent=31 // pred_check
          %p181 = pneg %p34
        $region34: #{tpu_custom_call.1} parent=31 // pred_check_branch
          %183 = sbr.rel (%p181) target = $region36
        $region35: #{tpu_custom_call.1} parent=31 // pred_region
          %p184 = scmp.lt.s32.totalorder %s14, 1
          %s185 = scalar_select %p184, %s14, 1
          %s186 = smul.addr %s185, 8
          %s187 = scalar_lea.vmem %s0, %s186
        $region36: #{tpu_custom_call.1} parent=31 // pred_fallthru
          _
      $region32: #{tpu_custom_call.1} parent=5 // pred_fallthru
        _
      %p188 = scmp.le.s32.totalorder 1, %s14
      %p189 = scmp.lt.s32.totalorder %s14, 3
      %p190 = pnand %p188, %p189
      %p191 = pneg %p190
      // Predicated region
      $region37: #{tpu_custom_call.1} parent=5 // pred_check
        _
      $region38: #{tpu_custom_call.1} parent=5 // pred_check_branch
        %193 = sbr.rel (%p190) target = $region40
      $region39: #{tpu_custom_call.1} parent=5 // pred_region
        %s194 = ssub.s32 %s14, 1
        %p195 = scmp.lt.s32.totalorder %s19, 1
        %s196 = scalar_select %p195, %s19, 1
        %s197 = smul.addr %s196, 8
        %s198 = scalar_lea.vmem %s0, %s197
        %p199 = pneg %p40
        %p200 = pneg %p37
        %p201 = pneg %p61
        %p202 = pneg %p58
        %p203 = pneg %p82
        %p204 = pneg %p79
        %p205 = pneg %p103
        %p206 = pneg %p100
        %p207 = pneg %p124
        %p208 = pneg %p121
        %p209 = pneg %p150
        %p210 = pneg %p147
        %s211 = sand.u32 %s137, 1
        %s212 = scalar_lea.sflag [#allocation3], %s211
        %s213 = sand.u32 %s137, 1
        %s214 = smul.addr %s213, 8
        %s215 = scalar_lea.vmem [#allocation2], %s214
        %p216 = scmp.lt.s32.totalorder %s19, 1
        %s217 = scalar_select %p216, %s19, 1
        %s218 = smul.addr %s217, 8
        %s219 = scalar_lea.vmem %s0, %s218
        %v220 = vld [vmem:[%s219] sm:$0xff]
        %v221 = vld [vmem:[%s1] sm:$0xff]
        %v222 = vld [vmem:[%s1 + $0x8] sm:$0xff]
        %v223 = vld [vmem:[%s1 + $0x10] sm:$0xff]
        %v224 = vld [vmem:[%s1 + $0x18] sm:$0xff]
        %v225 = vld [vmem:[%s1 + $0x20] sm:$0xff]
        %v226 = vld [vmem:[%s1 + $0x28] sm:$0xff]
        %v227 = vld [vmem:[%s1 + $0x30] sm:$0xff]
        %v228 = vld [vmem:[%s1 + $0x38] sm:$0xff]
        %v229 = vld [vmem:[%s1 + $0x40] sm:$0xff]
        %v230 = vld [vmem:[%s1 + $0x48] sm:$0xff]
        %v231 = vld [vmem:[%s1 + $0x50] sm:$0xff]
        %v232 = vld [vmem:[%s1 + $0x58] sm:$0xff]
        %v233 = vld [vmem:[%s1 + $0x60] sm:$0xff]
        %v234 = vld [vmem:[%s1 + $0x68] sm:$0xff]
        %v235 = vld [vmem:[%s1 + $0x70] sm:$0xff]
        %v236 = vld [vmem:[%s1 + $0x78] sm:$0xff]
        %v237 = vld [vmem:[%s2] sm:$0x3]
        %v239 = vperm.slane %v237, 0
        %v240 = vperm.slane %v237, 1
        %vm243 = vcmask 523264
        %v245 = vsel %vm243, %v220, 0
        %247 = vmatpush.msra.mxu0 0.0
        %248 = vmatpush.msra.mxu0 0.0
        %249 = vmatpush.msra.mxu0 0.0
        %250 = vmatpush.msra.mxu0 0.0
        %251 = vmatpush.msra.mxu0 0.0
        %252 = vmatpush.msra.mxu0 0.0
        %253 = vmatpush.msra.mxu0 0.0
        %254 = vmatpush.msra.mxu0 0.0
        %255 = vmatpush.msra.mxu0 %v235
        %256 = vmatpush.msra.mxu0 %v233
        %257 = vmatpush.msra.mxu0 %v231
        %258 = vmatpush.msra.mxu0 %v229
        %259 = vmatpush.msra.mxu0 %v227
        %260 = vmatpush.msra.mxu0 %v225
        %261 = vmatpush.msra.mxu0 %v223
        %262 = vmatpush.msra.mxu0 %v221
        %263 = vmatmul.f32.gmra.mxu0 %v245
        %v264 = vpop.f32.mrf.mxu0
        %v265 = vadd.f32 %v239, %v264
        %266 = vdwg.mxu0
        %267 = vmatpush.msra.mxu0 0.0
        %268 = vmatpush.msra.mxu0 0.0
        %269 = vmatpush.msra.mxu0 0.0
        %270 = vmatpush.msra.mxu0 0.0
        %271 = vmatpush.msra.mxu0 0.0
        %272 = vmatpush.msra.mxu0 0.0
        %273 = vmatpush.msra.mxu0 0.0
        %274 = vmatpush.msra.mxu0 0.0
        %275 = vmatpush.msra.mxu0 %v236
        %276 = vmatpush.msra.mxu0 %v234
        %277 = vmatpush.msra.mxu0 %v232
        %278 = vmatpush.msra.mxu0 %v230
        %279 = vmatpush.msra.mxu0 %v228
        %280 = vmatpush.msra.mxu0 %v226
        %281 = vmatpush.msra.mxu0 %v224
        %282 = vmatpush.msra.mxu0 %v222
        %283 = vmatmul.f32.gmra.mxu0 %v245
        %v284 = vpop.f32.mrf.mxu0
        %v285 = vadd.f32 %v240, %v284
        %286 = vdwg.mxu0
        %v287 = vmul.f32 %v265, %v265
        %v288 = vmul.f32 %v285, %v285
        %v289 = vmul.f32 %v287, 0.035677407
        %v290 = vmul.f32 %v288, 0.035677407
        %v291 = vadd.f32 %v289, 0.7978846
        %v292 = vadd.f32 %v290, 0.7978846
        %v293 = vmul.f32 %v265, %v291
        %v294 = vmul.f32 %v285, %v292
        %v295 = vmul.f32 %v265, 0.5
        %v296 = vmul.f32 %v285, 0.5
        %v297 = vtanh.pop %v293
        %v298 = vtanh.pop %v294
        %v299 = vadd.f32 %v297, 1.0
        %v300 = vadd.f32 %v298, 1.0
        %v301 = vmul.f32 %v295, %v299
        %v302 = vmul.f32 %v296, %v300
        %v303 = vld [vmem:[%s3] sm:$0xff]
        %v304 = vld [vmem:[%s3 + $0x8] sm:$0xff]
        %v305 = vld [vmem:[%s3 + $0x10] sm:$0xff]
        %v306 = vld [vmem:[%s3 + $0x18] sm:$0xff]
        %v307 = vld [vmem:[%s3 + $0x20] sm:$0xff]
        %v308 = vld [vmem:[%s3 + $0x28] sm:$0xff]
        %v309 = vld [vmem:[%s3 + $0x30] sm:$0xff]
        %v310 = vld [vmem:[%s3 + $0x38] sm:$0xff]
        %v311 = vld [vmem:[%s3 + $0x40] sm:$0xff]
        %v312 = vld [vmem:[%s3 + $0x48] sm:$0xff]
        %v313 = vld [vmem:[%s3 + $0x50] sm:$0xff]
        %v314 = vld [vmem:[%s3 + $0x58] sm:$0xff]
        %v315 = vld [vmem:[%s3 + $0x60] sm:$0xff]
        %v316 = vld [vmem:[%s3 + $0x68] sm:$0xff]
        %v317 = vld [vmem:[%s3 + $0x70] sm:$0xff]
        %v318 = vld [vmem:[%s3 + $0x78] sm:$0xff]
        %v319 = vld [vmem:[%s3 + $0x80] sm:$0xff]
        %v320 = vld [vmem:[%s3 + $0x88] sm:$0xff]
        %v321 = vld [vmem:[%s3 + $0x90] sm:$0xff]
        %v322 = vld [vmem:[%s3 + $0x98] sm:$0xff]
        %v323 = vld [vmem:[%s3 + $0xa0] sm:$0xff]
        %v324 = vld [vmem:[%s3 + $0xa8] sm:$0xff]
        %v325 = vld [vmem:[%s3 + $0xb0] sm:$0xff]
        %v326 = vld [vmem:[%s3 + $0xb8] sm:$0xff]
        %v327 = vld [vmem:[%s3 + $0xc0] sm:$0xff]
        %v328 = vld [vmem:[%s3 + $0xc8] sm:$0xff]
        %v329 = vld [vmem:[%s3 + $0xd0] sm:$0xff]
        %v330 = vld [vmem:[%s3 + $0xd8] sm:$0xff]
        %v331 = vld [vmem:[%s3 + $0xe0] sm:$0xff]
        %v332 = vld [vmem:[%s3 + $0xe8] sm:$0xff]
        %v333 = vld [vmem:[%s3 + $0xf0] sm:$0xff]
        %v334 = vld [vmem:[%s3 + $0xf8] sm:$0xff]
        %v335 = vld [vmem:[%s4] sm:$0x1]
        %v337 = vperm.slane %v335, 0
        %339 = vmatpush.msra.mxu0 %v318
        %340 = vmatpush.msra.mxu0 %v317
        %341 = vmatpush.msra.mxu0 %v316
        %342 = vmatpush.msra.mxu0 %v315
        %343 = vmatpush.msra.mxu0 %v314
        %344 = vmatpush.msra.mxu0 %v313
        %345 = vmatpush.msra.mxu0 %v312
        %346 = vmatpush.msra.mxu0 %v311
        %347 = vmatpush.msra.mxu0 %v310
        %348 = vmatpush.msra.mxu0 %v309
        %349 = vmatpush.msra.mxu0 %v308
        %350 = vmatpush.msra.mxu0 %v307
        %351 = vmatpush.msra.mxu0 %v306
        %352 = vmatpush.msra.mxu0 %v305
        %353 = vmatpush.msra.mxu0 %v304
        %354 = vmatpush.msra.mxu0 %v303
        %355 = vmatmul.f32.gmra.mxu0 %v301
        %v356 = vpop.f32.mrf.mxu0
        %v357 = vadd.f32 %v337, %v356
        %358 = vdwg.mxu0
        %359 = vmatpush.msra.mxu0 %v334
        %360 = vmatpush.msra.mxu0 %v333
        %361 = vmatpush.msra.mxu0 %v332
        %362 = vmatpush.msra.mxu0 %v331
        %363 = vmatpush.msra.mxu0 %v330
        %364 = vmatpush.msra.mxu0 %v329
        %365 = vmatpush.msra.mxu0 %v328
        %366 = vmatpush.msra.mxu0 %v327
        %367 = vmatpush.msra.mxu0 %v326
        %368 = vmatpush.msra.mxu0 %v325
        %369 = vmatpush.msra.mxu0 %v324
        %370 = vmatpush.msra.mxu0 %v323
        %371 = vmatpush.msra.mxu0 %v322
        %372 = vmatpush.msra.mxu0 %v321
        %373 = vmatpush.msra.mxu0 %v320
        %374 = vmatpush.msra.mxu0 %v319
        %375 = vmatmul.f32.gmra.mxu0 %v302
        %v376 = vpop.f32.mrf.mxu0
        %v377 = vadd.f32 %v357, %v376
        %378 = vdwg.mxu0
        %379 = vst.msk [vmem:[%s215] sm:$0xff] %vm243, %v377
        %s380 = sand.u32 %s137, 1
        %s381 = scalar_lea.sflag [#allocation3], %s380
        %s382 = sand.u32 %s137, 1
        %s383 = smul.addr %s382, 8
        %s384 = scalar_lea.vmem [#allocation2], %s383
        // Predicated region
        $region41: #{tpu_custom_call.1} parent=39 // pred_check
          %p385 = pneg %p147
        $region42: #{tpu_custom_call.1} parent=39 // pred_check_branch
          %387 = sbr.rel (%p385) target = $region44
        $region43: #{tpu_custom_call.1} parent=39 // pred_region
          %389 = vsyncadd %s381, 0
          %s390 = smul.addr %s19, 8
          %s391 = scalar_lea.hbm %s5, %s390
          %s393 = sshll.u32 %s384, 4
          %s394 = int_to_ptr.vmem [resolvable:$true] %s393
          %s395 = sshll.u32 %s391, 4
          %s396 = int_to_ptr.hbm [resolvable:$true] %s395
          %398 = dma.vmem_to_hbm [thread:$0]  %s394, 128, %s396, %s381
        $region44: #{tpu_custom_call.1} parent=39 // pred_fallthru
          _
      $region40: #{tpu_custom_call.1} parent=5 // pred_fallthru
        _
      %p399 = scmp.le.s32.totalorder 2, %s14
      // Predicated region
      $region45: #{tpu_custom_call.1} parent=5 // pred_check
        %p400 = pneg %p399
      $region46: #{tpu_custom_call.1} parent=5 // pred_check_branch
        %402 = sbr.rel (%p400) target = $region48
      $region47: #{tpu_custom_call.1} parent=5 // pred_region
        %s403 = ssub.s32 %s14, 2
        // Predicated region
        $region49: #{tpu_custom_call.1} parent=47 // pred_check
          %p404 = pneg %p153
        $region50: #{tpu_custom_call.1} parent=47 // pred_check_branch
          %406 = sbr.rel (%p404) target = $region52
        $region51: #{tpu_custom_call.1} parent=47 // pred_region
          %s407 = sand.u32 %s138, 1
          %s408 = scalar_lea.sflag [#allocation3], %s407
          %s409 = sand.u32 %s138, 1
          %s410 = smul.addr %s409, 8
          %s411 = scalar_lea.vmem [#allocation2], %s410
          %413 = dma.done %s408, 128
        $region52: #{tpu_custom_call.1} parent=47 // pred_fallthru
          _
      $region48: #{tpu_custom_call.1} parent=5 // pred_fallthru
        _
    $region6: #{tpu_custom_call.1} parent=1 // loop_footer
      %s18 = sadd.s32 1, %s14
    $region7: #{tpu_custom_call.1} parent=1 // loop_footer_branch
      %13 = sbr.rel target = $region3
    $region8: #{tpu_custom_call.1} parent=1 // loop_exit
      _
    %414 = vsyncpa [#allocation3], 1
    %s415 = scalar_lea.sflag [#allocation3], 1
    %416 = vsyncpa %s415, 1

</llo_original>
